<compile_context>
chip_gen: v6e
topology: v6e:2x2x1
jax: 0.10.0
libtpu: 0.0.40
codegen_flags: <defaults>
</compile_context>

<pallas_src>
import functools

import jax
import jax.numpy as jnp
from jax.experimental import pallas as pl
from jax.experimental.pallas import tpu as pltpu


def _round_up(n, m):
    return ((n + m - 1) // m) * m


def squeeze_last_dim(x):
    if x.ndim == 3 and x.shape[-1] == 1:
        return x[..., 0]
    return x


# ----------------------------------------------------------------------------
# Parameter slab layout: every section starts at an 8-sublane-aligned row
# offset and every section's rows/cols are zero-padded so in-kernel slices are
# full (8,128)-aligned tiles.
# ----------------------------------------------------------------------------
def _slab_layout(units, thetas_dim, backcast_length, forecast_length):
    U, TD, BL, FL = units, thetas_dim, backcast_length, forecast_length
    xk = _round_up(BL, 8)             # K rows of fc1 (x last dim padded to this)
    hp = _round_up(U, 128)            # padded width of hidden activations h
    tdp = _round_up(2 * TD, 128)      # padded width of fused theta [theta_b|theta_f]
    outp = _round_up(BL + FL, 128)    # padded width of fused head output
    cols = max(hp, tdp, outp)
    r_w1 = 0
    r_w2 = r_w1 + xk
    r_w3 = r_w2 + hp
    r_w4 = r_w3 + hp
    r_wt = r_w4 + hp                  # fused theta weight (hp, tdp)
    r_wh = r_wt + hp                  # block-diag head weight (tdp, outp)
    r_b = r_wh + tdp                  # 5 bias rows (padded to 8)
    rows = r_b + 8
    return dict(xk=xk, hp=hp, tdp=tdp, outp=outp, cols=cols,
                r_w1=r_w1, r_w2=r_w2, r_w3=r_w3, r_w4=r_w4,
                r_wt=r_wt, r_wh=r_wh, r_b=r_b, rows=rows)


def pack_params(params, units, thetas_dim, backcast_length, forecast_length):
    """Pack all weights/biases into one contiguous, zero-padded f32 slab."""
    U, TD, BL, FL = units, thetas_dim, backcast_length, forecast_length
    lay = _slab_layout(U, TD, BL, FL)
    slab = jnp.zeros((lay["rows"], lay["cols"]), jnp.float32)
    # fc weights (zero padding beyond U rows/cols keeps the widened math exact)
    slab = slab.at[lay["r_w1"]:lay["r_w1"] + BL, :U].set(params["w1"])
    slab = slab.at[lay["r_w2"]:lay["r_w2"] + U, :U].set(params["w2"])
    slab = slab.at[lay["r_w3"]:lay["r_w3"] + U, :U].set(params["w3"])
    slab = slab.at[lay["r_w4"]:lay["r_w4"] + U, :U].set(params["w4"])
    # fused theta projection: [wtb | wtf]  -> (U, 2*TD) inside a (hp, tdp) block
    slab = slab.at[lay["r_wt"]:lay["r_wt"] + U, :TD].set(params["wtb"])
    slab = slab.at[lay["r_wt"]:lay["r_wt"] + U, TD:2 * TD].set(params["wtf"])
    # block-diagonal head: theta @ [[wbc, 0], [0, wfc]] inside a (tdp, outp)
    # block (rows >= 2*TD stay zero, which is required once theta is widened).
    slab = slab.at[lay["r_wh"]:lay["r_wh"] + TD, :BL].set(params["wbc"])
    slab = slab.at[lay["r_wh"] + TD:lay["r_wh"] + 2 * TD, BL:BL + FL].set(params["wfc"])
    # biases: rows r_b .. r_b+4  (b1..b4, concatenated head bias)
    rb = lay["r_b"]
    slab = slab.at[rb + 0:rb + 1, :U].set(params["b1"])
    slab = slab.at[rb + 1:rb + 2, :U].set(params["b2"])
    slab = slab.at[rb + 2:rb + 3, :U].set(params["b3"])
    slab = slab.at[rb + 3:rb + 4, :U].set(params["b4"])
    slab = slab.at[rb + 4:rb + 5, :BL].set(params["bbc"])
    slab = slab.at[rb + 4:rb + 5, BL:BL + FL].set(params["bfc"])
    return slab


# ----------------------------------------------------------------------------
# Kernel
# ----------------------------------------------------------------------------
def _make_kernel(units, thetas_dim, backcast_length, forecast_length, lay):
    BL, FL = backcast_length, forecast_length
    XK, HP, TDP, OUTP = lay["xk"], lay["hp"], lay["tdp"], lay["outp"]
    r_w1, r_w2, r_w3, r_w4 = lay["r_w1"], lay["r_w2"], lay["r_w3"], lay["r_w4"]
    r_wt, r_wh, r_b = lay["r_wt"], lay["r_wh"], lay["r_b"]
    f32 = jnp.float32

    def kernel(x_ref, w_ref, bc_ref, fc_ref):
        x = x_ref[...]                                  # (b_tile, XK)
        biases = w_ref[r_b:r_b + 8, :]                  # (8, cols), 8-row aligned

        # 4 fused-bias + ReLU layers; every operand is a full 128-lane block.
        h = jnp.maximum(
            jnp.dot(x, w_ref[r_w1:r_w1 + XK, :HP], preferred_element_type=f32)
            + biases[0:1, :HP], 0.0)
        h = jnp.maximum(
            jnp.dot(h, w_ref[r_w2:r_w2 + HP, :HP], preferred_element_type=f32)
            + biases[1:2, :HP], 0.0)
        h = jnp.maximum(
            jnp.dot(h, w_ref[r_w3:r_w3 + HP, :HP], preferred_element_type=f32)
            + biases[2:3, :HP], 0.0)
        h = jnp.maximum(
            jnp.dot(h, w_ref[r_w4:r_w4 + HP, :HP], preferred_element_type=f32)
            + biases[3:4, :HP], 0.0)

        # Fused (bias-free) theta projection: [theta_b | theta_f]
        theta = jnp.dot(h, w_ref[r_wt:r_wt + HP, :TDP], preferred_element_type=f32)

        # Fused block-diagonal backcast/forecast head + concatenated bias.
        out = (jnp.dot(theta, w_ref[r_wh:r_wh + TDP, :OUTP],
                       preferred_element_type=f32)
               + biases[4:5, :OUTP])

        # Two narrow outputs: only the BL + FL useful columns hit HBM.
        bc_ref[...] = out[:, :BL]
        fc_ref[...] = out[:, BL:BL + FL]

    return kernel


# ----------------------------------------------------------------------------
# Forward wrapper
# ----------------------------------------------------------------------------
@functools.partial(jax.jit, static_argnums=(2, 3, 4, 5))
def generic_block_forward(x, slab, units, thetas_dim,
                          backcast_length, forecast_length):
    BL, FL = backcast_length, forecast_length
    x = squeeze_last_dim(x).astype(jnp.float32)
    B = x.shape[0]
    lay = _slab_layout(units, thetas_dim, BL, FL)
    XK = lay["xk"]

    # Batch tiling: cap 1024 (per-step overhead amortized, tiny VMEM footprint
    # on every generation).  Above the cap, keep >= 2 grid steps so the
    # "parallel" grid axis can shard across v7x's two TensorCores.
    B8 = _round_up(max(B, 1), 8)
    cap = 1024
    if B8 <= cap:
        b_tile = B8
    else:
        b_tile = min(cap, _round_up((B8 + 1) // 2, 8))
    b_pad = _round_up(B, b_tile)

    pad_b, pad_k = b_pad - B, XK - BL
    if pad_b or pad_k:
        x = jnp.pad(x, ((0, pad_b), (0, pad_k)))

    kernel = _make_kernel(units, thetas_dim, BL, FL, lay)

    backcast, forecast = pl.pallas_call(
        kernel,
        out_shape=(jax.ShapeDtypeStruct((b_pad, BL), jnp.float32),
                   jax.ShapeDtypeStruct((b_pad, FL), jnp.float32)),
        grid=(b_pad // b_tile,),
        in_specs=[
            pl.BlockSpec((b_tile, XK), lambda i: (i, 0)),
            # Weight slab: constant index_map -> fetched once, VMEM-resident.
            # TODO(synk): pl.Buffered(1) would drop the unused second pipeline
            # buffer (~0.3 MB); left at the default for maximum compatibility.
            pl.BlockSpec((lay["rows"], lay["cols"]), lambda i: (0, 0)),
        ],
        out_specs=(pl.BlockSpec((b_tile, BL), lambda i: (i, 0)),
                   pl.BlockSpec((b_tile, FL), lambda i: (i, 0))),
        compiler_params=pltpu.CompilerParams(
            dimension_semantics=("parallel",),
            vmem_limit_bytes=32 * 1024 * 1024),
    )(x, slab)

    if b_pad != B:
        backcast = backcast[:B]
        forecast = forecast[:B]
    return backcast, forecast


# ----------------------------------------------------------------------------
# Synthetic params + pure-JAX reference
# ----------------------------------------------------------------------------
def make_params(key, units, thetas_dim, backcast_length, forecast_length):
    ks = jax.random.split(key, 14)
    scale = 0.1

    def w(k, fi, fo):
        return (scale * jax.random.normal(k, (fi, fo))).astype(jnp.float32)

    def b(k, fo):
        return (scale * jax.random.normal(k, (1, fo))).astype(jnp.float32)

    return dict(
        w1=w(ks[0], backcast_length, units), b1=b(ks[1], units),
        w2=w(ks[2], units, units),           b2=b(ks[3], units),
        w3=w(ks[4], units, units),           b3=b(ks[5], units),
        w4=w(ks[6], units, units),           b4=b(ks[7], units),
        wtb=w(ks[8], units, thetas_dim),
        wtf=w(ks[9], units, thetas_dim),
        wbc=w(ks[10], thetas_dim, backcast_length), bbc=b(ks[11], backcast_length),
        wfc=w(ks[12], thetas_dim, forecast_length), bfc=b(ks[13], forecast_length),
    )


def reference_forward(x, params):
    x = squeeze_last_dim(x).astype(jnp.float32)
    h = jnp.maximum(x @ params["w1"] + params["b1"], 0.0)
    h = jnp.maximum(h @ params["w2"] + params["b2"], 0.0)
    h = jnp.maximum(h @ params["w3"] + params["b3"], 0.0)
    h = jnp.maximum(h @ params["w4"] + params["b4"], 0.0)
    theta_b = h @ params["wtb"]
    theta_f = h @ params["wtf"]
    backcast = theta_b @ params["wbc"] + params["bbc"]
    forecast = theta_f @ params["wfc"] + params["bfc"]
    return backcast, forecast


if __name__ == "__main__":
    batch = 8
    backcast_length = 10
    forecast_length = 5
    units = 32
    thetas_dim = 8

    key = jax.random.PRNGKey(0)
    k_x, k_p = jax.random.split(key)

    # Input with trailing singleton dim (exercises squeeze_last_dim).
    x = jax.random.normal(k_x, (batch, backcast_length, 1), dtype=jnp.float32)
    params = make_params(k_p, units, thetas_dim, backcast_length, forecast_length)

    # Pack parameters once (outside the hot path).
    slab = pack_params(params, units, thetas_dim, backcast_length, forecast_length)

    backcast, forecast = generic_block_forward(
        x, slab, units, thetas_dim, backcast_length, forecast_length)
    jax.block_until_ready((backcast, forecast))

    ref_b, ref_f = reference_forward(x, params)
    assert backcast.shape == (batch, backcast_length)
    assert forecast.shape == (batch, forecast_length)
    assert jnp.allclose(backcast, ref_b, atol=1e-4, rtol=1e-4)
    assert jnp.allclose(forecast, ref_f, atol=1e-4, rtol=1e-4)

    print("KERNEL_OK")
</pallas_src>

<mosaic_0001>
module attributes {stable_mosaic.version = 11 : i64} {
  func.func @kernel(%arg0: i32, %arg1: memref<8x16xf32, #tpu.memory_space<vmem>>, %arg2: memref<664x128xf32, #tpu.memory_space<vmem>>, %arg3: memref<8x10xf32, #tpu.memory_space<vmem>>, %arg4: memref<8x5xf32, #tpu.memory_space<vmem>>) attributes {dimension_semantics = [#tpu.dimension_semantics<parallel>], iteration_bounds = array<i64: 1>, scalar_prefetch = 0 : i64, scratch_operands = 0 : i64, tpu.core_type = #tpu.core_type<tc>, window_params = [{transform_indices = @transform_0, window_bounds = array<i64: 8, 16>}, {pipeline_mode = #tpu.pipeline_mode<synchronous>, transform_indices = @transform_1, window_bounds = array<i64: 664, 128>}, {transform_indices = @transform_2, window_bounds = array<i64: 8, 10>}, {transform_indices = @transform_3, window_bounds = array<i64: 8, 5>}]} {
    %c0 = arith.constant 0 : index
    %c0_0 = arith.constant 0 : index
    %0 = vector.load %arg1[%c0, %c0_0] : memref<8x16xf32, #tpu.memory_space<vmem>>, vector<8x16xf32>
    %c656 = arith.constant 656 : index
    %c0_1 = arith.constant 0 : index
    %1 = vector.load %arg2[%c656, %c0_1] : memref<664x128xf32, #tpu.memory_space<vmem>>, vector<8x128xf32>
    %c0_2 = arith.constant 0 : index
    %c0_3 = arith.constant 0 : index
    %2 = vector.load %arg2[%c0_2, %c0_3] : memref<664x128xf32, #tpu.memory_space<vmem>>, vector<16x128xf32>
    %cst = arith.constant dense<0.000000e+00> : vector<8x128xf32>
    %3 = tpu.matmul %0, %2, %cst {dimension_numbers = #tpu.dot_dimension_numbers<[1], [0], [0], [1], [0, 0, 1, 1], [], []>} : vector<8x16xf32>, vector<16x128xf32>, vector<8x128xf32> -> vector<8x128xf32>
    %4 = vector.extract_strided_slice %1 {offsets = [0, 0], sizes = [1, 128], strides = [1, 1]} : vector<8x128xf32> to vector<1x128xf32>
    %5 = vector.broadcast %4 : vector<1x128xf32> to vector<8x128xf32>
    %6 = arith.addf %3, %5 : vector<8x128xf32>
    %cst_4 = arith.constant 0.000000e+00 : f32
    %7 = vector.broadcast %cst_4 : f32 to vector<8x128xf32>
    %8 = arith.maximumf %6, %7 : vector<8x128xf32>
    %c16 = arith.constant 16 : index
    %c0_5 = arith.constant 0 : index
    %9 = vector.load %arg2[%c16, %c0_5] : memref<664x128xf32, #tpu.memory_space<vmem>>, vector<128x128xf32>
    %cst_6 = arith.constant dense<0.000000e+00> : vector<8x128xf32>
    %10 = tpu.matmul %8, %9, %cst_6 {dimension_numbers = #tpu.dot_dimension_numbers<[1], [0], [0], [1], [0, 0, 1, 1], [], []>} : vector<8x128xf32>, vector<128x128xf32>, vector<8x128xf32> -> vector<8x128xf32>
    %11 = vector.extract_strided_slice %1 {offsets = [1, 0], sizes = [1, 128], strides = [1, 1]} : vector<8x128xf32> to vector<1x128xf32>
    %12 = vector.broadcast %11 : vector<1x128xf32> to vector<8x128xf32>
    %13 = arith.addf %10, %12 : vector<8x128xf32>
    %cst_7 = arith.constant 0.000000e+00 : f32
    %14 = vector.broadcast %cst_7 : f32 to vector<8x128xf32>
    %15 = arith.maximumf %13, %14 : vector<8x128xf32>
    %c144 = arith.constant 144 : index
    %c0_8 = arith.constant 0 : index
    %16 = vector.load %arg2[%c144, %c0_8] : memref<664x128xf32, #tpu.memory_space<vmem>>, vector<128x128xf32>
    %cst_9 = arith.constant dense<0.000000e+00> : vector<8x128xf32>
    %17 = tpu.matmul %15, %16, %cst_9 {dimension_numbers = #tpu.dot_dimension_numbers<[1], [0], [0], [1], [0, 0, 1, 1], [], []>} : vector<8x128xf32>, vector<128x128xf32>, vector<8x128xf32> -> vector<8x128xf32>
    %18 = vector.extract_strided_slice %1 {offsets = [2, 0], sizes = [1, 128], strides = [1, 1]} : vector<8x128xf32> to vector<1x128xf32>
    %19 = vector.broadcast %18 : vector<1x128xf32> to vector<8x128xf32>
    %20 = arith.addf %17, %19 : vector<8x128xf32>
    %cst_10 = arith.constant 0.000000e+00 : f32
    %21 = vector.broadcast %cst_10 : f32 to vector<8x128xf32>
    %22 = arith.maximumf %20, %21 : vector<8x128xf32>
    %c272 = arith.constant 272 : index
    %c0_11 = arith.constant 0 : index
    %23 = vector.load %arg2[%c272, %c0_11] : memref<664x128xf32, #tpu.memory_space<vmem>>, vector<128x128xf32>
    %cst_12 = arith.constant dense<0.000000e+00> : vector<8x128xf32>
    %24 = tpu.matmul %22, %23, %cst_12 {dimension_numbers = #tpu.dot_dimension_numbers<[1], [0], [0], [1], [0, 0, 1, 1], [], []>} : vector<8x128xf32>, vector<128x128xf32>, vector<8x128xf32> -> vector<8x128xf32>
    %25 = vector.extract_strided_slice %1 {offsets = [3, 0], sizes = [1, 128], strides = [1, 1]} : vector<8x128xf32> to vector<1x128xf32>
    %26 = vector.broadcast %25 : vector<1x128xf32> to vector<8x128xf32>
    %27 = arith.addf %24, %26 : vector<8x128xf32>
    %cst_13 = arith.constant 0.000000e+00 : f32
    %28 = vector.broadcast %cst_13 : f32 to vector<8x128xf32>
    %29 = arith.maximumf %27, %28 : vector<8x128xf32>
    %c400 = arith.constant 400 : index
    %c0_14 = arith.constant 0 : index
    %30 = vector.load %arg2[%c400, %c0_14] : memref<664x128xf32, #tpu.memory_space<vmem>>, vector<128x128xf32>
    %cst_15 = arith.constant dense<0.000000e+00> : vector<8x128xf32>
    %31 = tpu.matmul %29, %30, %cst_15 {dimension_numbers = #tpu.dot_dimension_numbers<[1], [0], [0], [1], [0, 0, 1, 1], [], []>} : vector<8x128xf32>, vector<128x128xf32>, vector<8x128xf32> -> vector<8x128xf32>
    %c528 = arith.constant 528 : index
    %c0_16 = arith.constant 0 : index
    %32 = vector.load %arg2[%c528, %c0_16] : memref<664x128xf32, #tpu.memory_space<vmem>>, vector<128x128xf32>
    %cst_17 = arith.constant dense<0.000000e+00> : vector<8x128xf32>
    %33 = tpu.matmul %31, %32, %cst_17 {dimension_numbers = #tpu.dot_dimension_numbers<[1], [0], [0], [1], [0, 0, 1, 1], [], []>} : vector<8x128xf32>, vector<128x128xf32>, vector<8x128xf32> -> vector<8x128xf32>
    %34 = vector.extract_strided_slice %1 {offsets = [4, 0], sizes = [1, 128], strides = [1, 1]} : vector<8x128xf32> to vector<1x128xf32>
    %35 = vector.broadcast %34 : vector<1x128xf32> to vector<8x128xf32>
    %36 = arith.addf %33, %35 : vector<8x128xf32>
    %37 = vector.extract_strided_slice %36 {offsets = [0, 0], sizes = [8, 10], strides = [1, 1]} : vector<8x128xf32> to vector<8x10xf32>
    %c0_18 = arith.constant 0 : index
    %c0_19 = arith.constant 0 : index
    %38 = vector.load %arg3[%c0_18, %c0_19] : memref<8x10xf32, #tpu.memory_space<vmem>>, vector<8x10xf32>
    tpu.vector_store %arg3[%c0_18, %c0_19], %37 {strides = array<i32>} : memref<8x10xf32, #tpu.memory_space<vmem>>, vector<8x10xf32>,
    %39 = vector.extract_strided_slice %36 {offsets = [0, 10], sizes = [8, 5], strides = [1, 1]} : vector<8x128xf32> to vector<8x5xf32>
    %c0_20 = arith.constant 0 : index
    %c0_21 = arith.constant 0 : index
    %40 = vector.load %arg4[%c0_20, %c0_21] : memref<8x5xf32, #tpu.memory_space<vmem>>, vector<8x5xf32>
    tpu.vector_store %arg4[%c0_20, %c0_21], %39 {strides = array<i32>} : memref<8x5xf32, #tpu.memory_space<vmem>>, vector<8x5xf32>,
    return
  }
  func.func @transform_0(%arg0: i32) -> (i32, i32) {
    %c0_i32 = arith.constant 0 : i32
    %c0_i32_0 = arith.constant 0 : i32
    return %arg0, %c0_i32 : i32, i32
  }
  func.func @transform_1(%arg0: i32) -> (i32, i32) {
    %c0_i32 = arith.constant 0 : i32
    %c0_i32_0 = arith.constant 0 : i32
    %c0_i32_1 = arith.constant 0 : i32
    return %c0_i32, %c0_i32_0 : i32, i32
  }
  func.func @transform_2(%arg0: i32) -> (i32, i32) {
    %c0_i32 = arith.constant 0 : i32
    %c0_i32_0 = arith.constant 0 : i32
    return %arg0, %c0_i32 : i32, i32
  }
  func.func @transform_3(%arg0: i32) -> (i32, i32) {
    %c0_i32 = arith.constant 0 : i32
    %c0_i32_0 = arith.constant 0 : i32
    return %arg0, %c0_i32 : i32, i32
  }
}

</mosaic_0001>

<llo_original>
// kernel: generic_block_forward.1
$region0: #{generic_block_forward.1}
  #allocation0 [shape = 'u32[]', space=smem, size = 0x4, offset = 0x4, fixed_abs, tag = 'smem constant byte address 0x4 - core index']
  #allocation1 [shape = 'u32[144,128]{1,0:T(1,128)}', space=vmem, size = 0x12000, scoped, tag = 'internal scratch']
  %s0 = inlined_call_operand.vmem [shape: f32[8,16], index: 0, kind: input, shape index: {}]
  %s1 = inlined_call_operand.hbm [shape: f32[664,128], index: 1, kind: input, shape index: {}]
  %s2 = inlined_call_operand.hbm [shape: f32[8,10], index: 2, kind: output, shape index: {0}]
  %s3 = inlined_call_operand.hbm [shape: f32[8,5], index: 3, kind: output, shape index: {1}]
  %4 = xla_tuple %s2, %s3
  %s5 = sld [smem:[#allocation0]]
  $region30: #{generic_block_forward.1} parent=0
    _
  %s7 = ssub.s32 1, %s5
  %s8 = scalar_select 0, %s7, %s5
  $region1: #{generic_block_forward.1} parent=0
    #allocation2 [shape = 'u8[339968]{0}', space=vmem, size = 0x53000, scoped, tag = 'input window, operand 1, single buffered']
    #allocation3 [shape = 's32[1]{0}', space=sflag, size = 0x4, scoped, tag = 'scoped memory for generic_block_forward.1']
    #allocation4 [shape = 's32[1]{0}', space=sflag, size = 0x4, scoped, tag = 'scoped memory for generic_block_forward.1']
    #allocation5 [shape = 'u8[4096]{0}', space=vmem, size = 0x1000, scoped, tag = 'output window, operand 0, single buffered']
    #allocation6 [shape = 'u8[4096]{0}', space=vmem, size = 0x1000, scoped, tag = 'output window, operand 1, single buffered']
    #allocation7 [shape = 's32[1]{0}', space=sflag, size = 0x4, scoped, tag = 'scoped memory for generic_block_forward.1']
    %9 = vsyncpa [#allocation3], 0
    %10 = vsyncpa [#allocation4], 0
    %11 = vsyncpa [#allocation7], 0
    // Predicated region
    $region2: #{generic_block_forward.1} parent=1 // pred_check
      _
    $region3: #{generic_block_forward.1} parent=1 // pred_check_branch
      %13 = sbr.rel (0) target = $region5
    $region4: #{generic_block_forward.1} parent=1 // pred_region
      _
    $region5: #{generic_block_forward.1} parent=1 // pred_fallthru
      _
    // Predicated region
    $region6: #{generic_block_forward.1} parent=1 // pred_check
      _
    $region7: #{generic_block_forward.1} parent=1 // pred_check_branch
      %15 = sbr.rel (0) target = $region9
    $region8: #{generic_block_forward.1} parent=1 // pred_region
      %s17 = ssub.s32 10624, 10624
      %18 = vsyncadd [#allocation3], %s17
      %s19 = sshll.u32 [#allocation2], 4
      %s20 = int_to_ptr.vmem [resolvable:$true] %s19
      %25 = dma.hbm_to_vmem [thread:$0]  %s1, 10624, %s20, [#allocation3], 128, 128, 8
    $region9: #{generic_block_forward.1} parent=1 // pred_fallthru
      _
    // Predicated region
    $region10: #{generic_block_forward.1} parent=1 // pred_check
      _
    $region11: #{generic_block_forward.1} parent=1 // pred_check_branch
      %27 = sbr.rel (0) target = $region13
    $region12: #{generic_block_forward.1} parent=1 // pred_region
      %28 = dma.done [#allocation3], 10624
    $region13: #{generic_block_forward.1} parent=1 // pred_fallthru
      _
    %v29 = vld [vmem:[%s0] sm:$0xff]
    %v30 = vld [vmem:[#allocation2 + $0x290] sm:$0xff]
    %v31 = vld [vmem:[#allocation2] sm:$0xff]
    %v32 = vld [vmem:[#allocation2 + $0x8] sm:$0xff]
    %v33 = vlaneseq
    %v34 = vshrl.u32 %v33, 7
    %v35 = vsub.s32 0, %v34
    %v36 = vrot.slane %v30, %v35
    %vm37 = vcmask 130048
    %v39 = vsel %vm37, %v29, 0
    %41 = vmatprep.subr.mxu0 0.0
    %42 = vmatpush1.msra.mxu0 0.0
    %43 = vmatprep.subr.mxu0 0.0
    %44 = vmatpush1.msra.mxu0 0.0
    %45 = vmatprep.subr.mxu0 0.0
    %46 = vmatpush1.msra.mxu0 0.0
    %47 = vmatprep.subr.mxu0 0.0
    %48 = vmatpush1.msra.mxu0 0.0
    %49 = vmatprep.subr.mxu0 0.0
    %50 = vmatpush1.msra.mxu0 0.0
    %51 = vmatprep.subr.mxu0 0.0
    %52 = vmatpush1.msra.mxu0 0.0
    %53 = vmatprep.subr.mxu0 0.0
    %54 = vmatpush1.msra.mxu0 0.0
    %55 = vmatprep.subr.mxu0 0.0
    %56 = vmatpush1.msra.mxu0 0.0
    %57 = vmatprep.subr.mxu0 0.0
    %58 = vmatpush1.msra.mxu0 0.0
    %59 = vmatprep.subr.mxu0 0.0
    %60 = vmatpush1.msra.mxu0 0.0
    %61 = vmatprep.subr.mxu0 0.0
    %62 = vmatpush1.msra.mxu0 0.0
    %63 = vmatprep.subr.mxu0 0.0
    %64 = vmatpush1.msra.mxu0 0.0
    %65 = vmatprep.subr.mxu0 0.0
    %66 = vmatpush1.msra.mxu0 0.0
    %67 = vmatprep.subr.mxu0 0.0
    %68 = vmatpush1.msra.mxu0 0.0
    %69 = vmatprep.subr.mxu0 0.0
    %70 = vmatpush1.msra.mxu0 %v32
    %71 = vmatprep.subr.mxu0 0.0
    %72 = vmatpush1.msra.mxu0 %v31
    %73 = vmatprep.subr.mxu0 0.0
    %74 = vmatpush2.msra.mxu0 0.0
    %75 = vmatprep.subr.mxu0 0.0
    %76 = vmatpush2.msra.mxu0 0.0
    %77 = vmatprep.subr.mxu0 0.0
    %78 = vmatpush2.msra.mxu0 0.0
    %79 = vmatprep.subr.mxu0 0.0
    %80 = vmatpush2.msra.mxu0 0.0
    %81 = vmatprep.subr.mxu0 0.0
    %82 = vmatpush2.msra.mxu0 0.0
    %83 = vmatprep.subr.mxu0 0.0
    %84 = vmatpush2.msra.mxu0 0.0
    %85 = vmatprep.subr.mxu0 0.0
    %86 = vmatpush2.msra.mxu0 0.0
    %87 = vmatprep.subr.mxu0 0.0
    %88 = vmatpush2.msra.mxu0 0.0
    %89 = vmatprep.subr.mxu0 0.0
    %90 = vmatpush2.msra.mxu0 0.0
    %91 = vmatprep.subr.mxu0 0.0
    %92 = vmatpush2.msra.mxu0 0.0
    %93 = vmatprep.subr.mxu0 0.0
    %94 = vmatpush2.msra.mxu0 0.0
    %95 = vmatprep.subr.mxu0 0.0
    %96 = vmatpush2.msra.mxu0 0.0
    %97 = vmatprep.subr.mxu0 0.0
    %98 = vmatpush2.msra.mxu0 0.0
    %99 = vmatprep.subr.mxu0 0.0
    %100 = vmatpush2.msra.mxu0 0.0
    %101 = vmatprep.subr.mxu0 0.0
    %102 = vmatpush2.msra.mxu0 0.0
    %103 = vmatprep.subr.mxu0 0.0
    %104 = vmatpush2.msra.mxu0 0.0
    %105 = vmatprep.mubr.f32.mxu0 0.0
    %106 = vmatmul.mubr.f32.gmra.mxu0 %v39
    %v107 = vpop.f32.mrf.mxu0
    %v108 = vadd.f32 %v36, %v107
    %v109 = vpop.f32.mrf.mxu0
    %110 = vdwg.mxu0
    %v111 = vmax.f32 %v108, 0.0
    %v112 = vld [vmem:[#allocation2 + $0x10] sm:$0xff]
    %v113 = vld [vmem:[#allocation2 + $0x18] sm:$0xff]
    %v114 = vld [vmem:[#allocation2 + $0x20] sm:$0xff]
    %v115 = vld [vmem:[#allocation2 + $0x28] sm:$0xff]
    %v116 = vld [vmem:[#allocation2 + $0x30] sm:$0xff]
    %v117 = vld [vmem:[#allocation2 + $0x38] sm:$0xff]
    %v118 = vld [vmem:[#allocation2 + $0x40] sm:$0xff]
    %v119 = vld [vmem:[#allocation2 + $0x48] sm:$0xff]
    %v120 = vld [vmem:[#allocation2 + $0x50] sm:$0xff]
    %v121 = vld [vmem:[#allocation2 + $0x58] sm:$0xff]
    %v122 = vld [vmem:[#allocation2 + $0x60] sm:$0xff]
    %v123 = vld [vmem:[#allocation2 + $0x68] sm:$0xff]
    %v124 = vld [vmem:[#allocation2 + $0x70] sm:$0xff]
    %v125 = vld [vmem:[#allocation2 + $0x78] sm:$0xff]
    %v126 = vld [vmem:[#allocation2 + $0x80] sm:$0xff]
    %v127 = vld [vmem:[#allocation2 + $0x88] sm:$0xff]
    %v128 = vlaneseq
    %v129 = vshrl.u32 %v128, 7
    %v130 = vsub.s32 1, %v129
    %v131 = vrot.slane %v30, %v130
    %132 = vmatprep.subr.mxu0 0.0
    %133 = vmatpush1.msra.mxu0 %v127
    %134 = vmatprep.subr.mxu0 0.0
    %135 = vmatpush1.msra.mxu0 %v126
    %136 = vmatprep.subr.mxu0 0.0
    %137 = vmatpush1.msra.mxu0 %v125
    %138 = vmatprep.subr.mxu0 0.0
    %139 = vmatpush1.msra.mxu0 %v124
    %140 = vmatprep.subr.mxu0 0.0
    %141 = vmatpush1.msra.mxu0 %v123
    %142 = vmatprep.subr.mxu0 0.0
    %143 = vmatpush1.msra.mxu0 %v122
    %144 = vmatprep.subr.mxu0 0.0
    %145 = vmatpush1.msra.mxu0 %v121
    %146 = vmatprep.subr.mxu0 0.0
    %147 = vmatpush1.msra.mxu0 %v120
    %148 = vmatprep.subr.mxu0 0.0
    %149 = vmatpush1.msra.mxu0 %v119
    %150 = vmatprep.subr.mxu0 0.0
    %151 = vmatpush1.msra.mxu0 %v118
    %152 = vmatprep.subr.mxu0 0.0
    %153 = vmatpush1.msra.mxu0 %v117
    %154 = vmatprep.subr.mxu0 0.0
    %155 = vmatpush1.msra.mxu0 %v116
    %156 = vmatprep.subr.mxu0 0.0
    %157 = vmatpush1.msra.mxu0 %v115
    %158 = vmatprep.subr.mxu0 0.0
    %159 = vmatpush1.msra.mxu0 %v114
    %160 = vmatprep.subr.mxu0 0.0
    %161 = vmatpush1.msra.mxu0 %v113
    %162 = vmatprep.subr.mxu0 0.0
    %163 = vmatpush1.msra.mxu0 %v112
    %164 = vmatprep.subr.mxu0 0.0
    %165 = vmatpush2.msra.mxu0 0.0
    %166 = vmatprep.subr.mxu0 0.0
    %167 = vmatpush2.msra.mxu0 0.0
    %168 = vmatprep.subr.mxu0 0.0
    %169 = vmatpush2.msra.mxu0 0.0
    %170 = vmatprep.subr.mxu0 0.0
    %171 = vmatpush2.msra.mxu0 0.0
    %172 = vmatprep.subr.mxu0 0.0
    %173 = vmatpush2.msra.mxu0 0.0
    %174 = vmatprep.subr.mxu0 0.0
    %175 = vmatpush2.msra.mxu0 0.0
    %176 = vmatprep.subr.mxu0 0.0
    %177 = vmatpush2.msra.mxu0 0.0
    %178 = vmatprep.subr.mxu0 0.0
    %179 = vmatpush2.msra.mxu0 0.0
    %180 = vmatprep.subr.mxu0 0.0
    %181 = vmatpush2.msra.mxu0 0.0
    %182 = vmatprep.subr.mxu0 0.0
    %183 = vmatpush2.msra.mxu0 0.0
    %184 = vmatprep.subr.mxu0 0.0
    %185 = vmatpush2.msra.mxu0 0.0
    %186 = vmatprep.subr.mxu0 0.0
    %187 = vmatpush2.msra.mxu0 0.0
    %188 = vmatprep.subr.mxu0 0.0
    %189 = vmatpush2.msra.mxu0 0.0
    %190 = vmatprep.subr.mxu0 0.0
    %191 = vmatpush2.msra.mxu0 0.0
    %192 = vmatprep.subr.mxu0 0.0
    %193 = vmatpush2.msra.mxu0 0.0
    %194 = vmatprep.subr.mxu0 0.0
    %195 = vmatpush2.msra.mxu0 0.0
    %196 = vmatprep.mubr.f32.mxu0 0.0
    %197 = vmatmul.mubr.f32.gmra.mxu0 %v111
    %v198 = vpop.f32.mrf.mxu0
    %v199 = vadd.f32 %v131, %v198
    %v200 = vpop.f32.mrf.mxu0
    %201 = vdwg.mxu0
    %v202 = vmax.f32 %v199, 0.0
    %v203 = vld [vmem:[#allocation2 + $0x90] sm:$0xff]
    %v204 = vld [vmem:[#allocation2 + $0x98] sm:$0xff]
    %v205 = vld [vmem:[#allocation2 + $0xa0] sm:$0xff]
    %v206 = vld [vmem:[#allocation2 + $0xa8] sm:$0xff]
    %v207 = vld [vmem:[#allocation2 + $0xb0] sm:$0xff]
    %v208 = vld [vmem:[#allocation2 + $0xb8] sm:$0xff]
    %v209 = vld [vmem:[#allocation2 + $0xc0] sm:$0xff]
    %v210 = vld [vmem:[#allocation2 + $0xc8] sm:$0xff]
    %v211 = vld [vmem:[#allocation2 + $0xd0] sm:$0xff]
    %v212 = vld [vmem:[#allocation2 + $0xd8] sm:$0xff]
    %v213 = vld [vmem:[#allocation2 + $0xe0] sm:$0xff]
    %v214 = vld [vmem:[#allocation2 + $0xe8] sm:$0xff]
    %v215 = vld [vmem:[#allocation2 + $0xf0] sm:$0xff]
    %v216 = vld [vmem:[#allocation2 + $0xf8] sm:$0xff]
    %v217 = vld [vmem:[#allocation2 + $0x100] sm:$0xff]
    %v218 = vld [vmem:[#allocation2 + $0x108] sm:$0xff]
    %v219 = vlaneseq
    %v220 = vshrl.u32 %v219, 7
    %v221 = vsub.s32 2, %v220
    %v222 = vrot.slane %v30, %v221
    %223 = vmatprep.subr.mxu0 0.0
    %224 = vmatpush1.msra.mxu0 %v218
    %225 = vmatprep.subr.mxu0 0.0
    %226 = vmatpush1.msra.mxu0 %v217
    %227 = vmatprep.subr.mxu0 0.0
    %228 = vmatpush1.msra.mxu0 %v216
    %229 = vmatprep.subr.mxu0 0.0
    %230 = vmatpush1.msra.mxu0 %v215
    %231 = vmatprep.subr.mxu0 0.0
    %232 = vmatpush1.msra.mxu0 %v214
    %233 = vmatprep.subr.mxu0 0.0
    %234 = vmatpush1.msra.mxu0 %v213
    %235 = vmatprep.subr.mxu0 0.0
    %236 = vmatpush1.msra.mxu0 %v212
    %237 = vmatprep.subr.mxu0 0.0
    %238 = vmatpush1.msra.mxu0 %v211
    %239 = vmatprep.subr.mxu0 0.0
    %240 = vmatpush1.msra.mxu0 %v210
    %241 = vmatprep.subr.mxu0 0.0
    %242 = vmatpush1.msra.mxu0 %v209
    %243 = vmatprep.subr.mxu0 0.0
    %244 = vmatpush1.msra.mxu0 %v208
    %245 = vmatprep.subr.mxu0 0.0
    %246 = vmatpush1.msra.mxu0 %v207
    %247 = vmatprep.subr.mxu0 0.0
    %248 = vmatpush1.msra.mxu0 %v206
    %249 = vmatprep.subr.mxu0 0.0
    %250 = vmatpush1.msra.mxu0 %v205
    %251 = vmatprep.subr.mxu0 0.0
    %252 = vmatpush1.msra.mxu0 %v204
    %253 = vmatprep.subr.mxu0 0.0
    %254 = vmatpush1.msra.mxu0 %v203
    %255 = vmatprep.subr.mxu0 0.0
    %256 = vmatpush2.msra.mxu0 0.0
    %257 = vmatprep.subr.mxu0 0.0
    %258 = vmatpush2.msra.mxu0 0.0
    %259 = vmatprep.subr.mxu0 0.0
    %260 = vmatpush2.msra.mxu0 0.0
    %261 = vmatprep.subr.mxu0 0.0
    %262 = vmatpush2.msra.mxu0 0.0
    %263 = vmatprep.subr.mxu0 0.0
    %264 = vmatpush2.msra.mxu0 0.0
    %265 = vmatprep.subr.mxu0 0.0
    %266 = vmatpush2.msra.mxu0 0.0
    %267 = vmatprep.subr.mxu0 0.0
    %268 = vmatpush2.msra.mxu0 0.0
    %269 = vmatprep.subr.mxu0 0.0
    %270 = vmatpush2.msra.mxu0 0.0
    %271 = vmatprep.subr.mxu0 0.0
    %272 = vmatpush2.msra.mxu0 0.0
    %273 = vmatprep.subr.mxu0 0.0
    %274 = vmatpush2.msra.mxu0 0.0
    %275 = vmatprep.subr.mxu0 0.0
    %276 = vmatpush2.msra.mxu0 0.0
    %277 = vmatprep.subr.mxu0 0.0
    %278 = vmatpush2.msra.mxu0 0.0
    %279 = vmatprep.subr.mxu0 0.0
    %280 = vmatpush2.msra.mxu0 0.0
    %281 = vmatprep.subr.mxu0 0.0
    %282 = vmatpush2.msra.mxu0 0.0
    %283 = vmatprep.subr.mxu0 0.0
    %284 = vmatpush2.msra.mxu0 0.0
    %285 = vmatprep.subr.mxu0 0.0
    %286 = vmatpush2.msra.mxu0 0.0
    %287 = vmatprep.mubr.f32.mxu0 0.0
    %288 = vmatmul.mubr.f32.gmra.mxu0 %v202
    %v289 = vpop.f32.mrf.mxu0
    %v290 = vadd.f32 %v222, %v289
    %v291 = vpop.f32.mrf.mxu0
    %292 = vdwg.mxu0
    %v293 = vmax.f32 %v290, 0.0
    %v294 = vld [vmem:[#allocation2 + $0x110] sm:$0xff]
    %v295 = vld [vmem:[#allocation2 + $0x118] sm:$0xff]
    %v296 = vld [vmem:[#allocation2 + $0x120] sm:$0xff]
    %v297 = vld [vmem:[#allocation2 + $0x128] sm:$0xff]
    %v298 = vld [vmem:[#allocation2 + $0x130] sm:$0xff]
    %v299 = vld [vmem:[#allocation2 + $0x138] sm:$0xff]
    %v300 = vld [vmem:[#allocation2 + $0x140] sm:$0xff]
    %v301 = vld [vmem:[#allocation2 + $0x148] sm:$0xff]
    %v302 = vld [vmem:[#allocation2 + $0x150] sm:$0xff]
    %v303 = vld [vmem:[#allocation2 + $0x158] sm:$0xff]
    %v304 = vld [vmem:[#allocation2 + $0x160] sm:$0xff]
    %v305 = vld [vmem:[#allocation2 + $0x168] sm:$0xff]
    %v306 = vld [vmem:[#allocation2 + $0x170] sm:$0xff]
    %v307 = vld [vmem:[#allocation2 + $0x178] sm:$0xff]
    %v308 = vld [vmem:[#allocation2 + $0x180] sm:$0xff]
    %v309 = vld [vmem:[#allocation2 + $0x188] sm:$0xff]
    %v310 = vlaneseq
    %v311 = vshrl.u32 %v310, 7
    %v312 = vsub.s32 3, %v311
    %v313 = vrot.slane %v30, %v312
    %314 = vmatprep.subr.mxu0 0.0
    %315 = vmatpush1.msra.mxu0 %v309
    %316 = vmatprep.subr.mxu0 0.0
    %317 = vmatpush1.msra.mxu0 %v308
    %318 = vmatprep.subr.mxu0 0.0
    %319 = vmatpush1.msra.mxu0 %v307
    %320 = vmatprep.subr.mxu0 0.0
    %321 = vmatpush1.msra.mxu0 %v306
    %322 = vmatprep.subr.mxu0 0.0
    %323 = vmatpush1.msra.mxu0 %v305
    %324 = vmatprep.subr.mxu0 0.0
    %325 = vmatpush1.msra.mxu0 %v304
    %326 = vmatprep.subr.mxu0 0.0
    %327 = vmatpush1.msra.mxu0 %v303
    %328 = vmatprep.subr.mxu0 0.0
    %329 = vmatpush1.msra.mxu0 %v302
    %330 = vmatprep.subr.mxu0 0.0
    %331 = vmatpush1.msra.mxu0 %v301
    %332 = vmatprep.subr.mxu0 0.0
    %333 = vmatpush1.msra.mxu0 %v300
    %334 = vmatprep.subr.mxu0 0.0
    %335 = vmatpush1.msra.mxu0 %v299
    %336 = vmatprep.subr.mxu0 0.0
    %337 = vmatpush1.msra.mxu0 %v298
    %338 = vmatprep.subr.mxu0 0.0
    %339 = vmatpush1.msra.mxu0 %v297
    %340 = vmatprep.subr.mxu0 0.0
    %341 = vmatpush1.msra.mxu0 %v296
    %342 = vmatprep.subr.mxu0 0.0
    %343 = vmatpush1.msra.mxu0 %v295
    %344 = vmatprep.subr.mxu0 0.0
    %345 = vmatpush1.msra.mxu0 %v294
    %346 = vmatprep.subr.mxu0 0.0
    %347 = vmatpush2.msra.mxu0 0.0
    %348 = vmatprep.subr.mxu0 0.0
    %349 = vmatpush2.msra.mxu0 0.0
    %350 = vmatprep.subr.mxu0 0.0
    %351 = vmatpush2.msra.mxu0 0.0
    %352 = vmatprep.subr.mxu0 0.0
    %353 = vmatpush2.msra.mxu0 0.0
    %354 = vmatprep.subr.mxu0 0.0
    %355 = vmatpush2.msra.mxu0 0.0
    %356 = vmatprep.subr.mxu0 0.0
    %357 = vmatpush2.msra.mxu0 0.0
    %358 = vmatprep.subr.mxu0 0.0
    %359 = vmatpush2.msra.mxu0 0.0
    %360 = vmatprep.subr.mxu0 0.0
    %361 = vmatpush2.msra.mxu0 0.0
    %362 = vmatprep.subr.mxu0 0.0
    %363 = vmatpush2.msra.mxu0 0.0
    %364 = vmatprep.subr.mxu0 0.0
    %365 = vmatpush2.msra.mxu0 0.0
    %366 = vmatprep.subr.mxu0 0.0
    %367 = vmatpush2.msra.mxu0 0.0
    %368 = vmatprep.subr.mxu0 0.0
    %369 = vmatpush2.msra.mxu0 0.0
    %370 = vmatprep.subr.mxu0 0.0
    %371 = vmatpush2.msra.mxu0 0.0
    %372 = vmatprep.subr.mxu0 0.0
    %373 = vmatpush2.msra.mxu0 0.0
    %374 = vmatprep.subr.mxu0 0.0
    %375 = vmatpush2.msra.mxu0 0.0
    %376 = vmatprep.subr.mxu0 0.0
    %377 = vmatpush2.msra.mxu0 0.0
    %378 = vmatprep.mubr.f32.mxu0 0.0
    %379 = vmatmul.mubr.f32.gmra.mxu0 %v293
    %v380 = vpop.f32.mrf.mxu0
    %v381 = vadd.f32 %v313, %v380
    %v382 = vpop.f32.mrf.mxu0
    %383 = vdwg.mxu0
    %v384 = vmax.f32 %v381, 0.0
    %v385 = vld [vmem:[#allocation2 + $0x190] sm:$0xff]
    %v386 = vld [vmem:[#allocation2 + $0x198] sm:$0xff]
    %v387 = vld [vmem:[#allocation2 + $0x1a0] sm:$0xff]
    %v388 = vld [vmem:[#allocation2 + $0x1a8] sm:$0xff]
    %v389 = vld [vmem:[#allocation2 + $0x1b0] sm:$0xff]
    %v390 = vld [vmem:[#allocation2 + $0x1b8] sm:$0xff]
    %v391 = vld [vmem:[#allocation2 + $0x1c0] sm:$0xff]
    %v392 = vld [vmem:[#allocation2 + $0x1c8] sm:$0xff]
    %v393 = vld [vmem:[#allocation2 + $0x1d0] sm:$0xff]
    %v394 = vld [vmem:[#allocation2 + $0x1d8] sm:$0xff]
    %v395 = vld [vmem:[#allocation2 + $0x1e0] sm:$0xff]
    %v396 = vld [vmem:[#allocation2 + $0x1e8] sm:$0xff]
    %v397 = vld [vmem:[#allocation2 + $0x1f0] sm:$0xff]
    %v398 = vld [vmem:[#allocation2 + $0x1f8] sm:$0xff]
    %v399 = vld [vmem:[#allocation2 + $0x200] sm:$0xff]
    %v400 = vld [vmem:[#allocation2 + $0x208] sm:$0xff]
    %401 = vmatprep.subr.mxu0 0.0
    %402 = vmatpush1.msra.mxu0 %v400
    %403 = vmatprep.subr.mxu0 0.0
    %404 = vmatpush1.msra.mxu0 %v399
    %405 = vmatprep.subr.mxu0 0.0
    %406 = vmatpush1.msra.mxu0 %v398
    %407 = vmatprep.subr.mxu0 0.0
    %408 = vmatpush1.msra.mxu0 %v397
    %409 = vmatprep.subr.mxu0 0.0
    %410 = vmatpush1.msra.mxu0 %v396
    %411 = vmatprep.subr.mxu0 0.0
    %412 = vmatpush1.msra.mxu0 %v395
    %413 = vmatprep.subr.mxu0 0.0
    %414 = vmatpush1.msra.mxu0 %v394
    %415 = vmatprep.subr.mxu0 0.0
    %416 = vmatpush1.msra.mxu0 %v393
    %417 = vmatprep.subr.mxu0 0.0
    %418 = vmatpush1.msra.mxu0 %v392
    %419 = vmatprep.subr.mxu0 0.0
    %420 = vmatpush1.msra.mxu0 %v391
    %421 = vmatprep.subr.mxu0 0.0
    %422 = vmatpush1.msra.mxu0 %v390
    %423 = vmatprep.subr.mxu0 0.0
    %424 = vmatpush1.msra.mxu0 %v389
    %425 = vmatprep.subr.mxu0 0.0
    %426 = vmatpush1.msra.mxu0 %v388
    %427 = vmatprep.subr.mxu0 0.0
    %428 = vmatpush1.msra.mxu0 %v387
    %429 = vmatprep.subr.mxu0 0.0
    %430 = vmatpush1.msra.mxu0 %v386
    %431 = vmatprep.subr.mxu0 0.0
    %432 = vmatpush1.msra.mxu0 %v385
    %433 = vmatprep.subr.mxu0 0.0
    %434 = vmatpush2.msra.mxu0 0.0
    %435 = vmatprep.subr.mxu0 0.0
    %436 = vmatpush2.msra.mxu0 0.0
    %437 = vmatprep.subr.mxu0 0.0
    %438 = vmatpush2.msra.mxu0 0.0
    %439 = vmatprep.subr.mxu0 0.0
    %440 = vmatpush2.msra.mxu0 0.0
    %441 = vmatprep.subr.mxu0 0.0
    %442 = vmatpush2.msra.mxu0 0.0
    %443 = vmatprep.subr.mxu0 0.0
    %444 = vmatpush2.msra.mxu0 0.0
    %445 = vmatprep.subr.mxu0 0.0
    %446 = vmatpush2.msra.mxu0 0.0
    %447 = vmatprep.subr.mxu0 0.0
    %448 = vmatpush2.msra.mxu0 0.0
    %449 = vmatprep.subr.mxu0 0.0
    %450 = vmatpush2.msra.mxu0 0.0
    %451 = vmatprep.subr.mxu0 0.0
    %452 = vmatpush2.msra.mxu0 0.0
    %453 = vmatprep.subr.mxu0 0.0
    %454 = vmatpush2.msra.mxu0 0.0
    %455 = vmatprep.subr.mxu0 0.0
    %456 = vmatpush2.msra.mxu0 0.0
    %457 = vmatprep.subr.mxu0 0.0
    %458 = vmatpush2.msra.mxu0 0.0
    %459 = vmatprep.subr.mxu0 0.0
    %460 = vmatpush2.msra.mxu0 0.0
    %461 = vmatprep.subr.mxu0 0.0
    %462 = vmatpush2.msra.mxu0 0.0
    %463 = vmatprep.subr.mxu0 0.0
    %464 = vmatpush2.msra.mxu0 0.0
    %465 = vmatprep.mubr.f32.mxu0 0.0
    %466 = vmatmul.mubr.f32.gmra.mxu0 %v384
    %v467 = vpop.f32.mrf.mxu0
    %v468 = vadd.f32 0.0, %v467
    %v469 = vpop.f32.mrf.mxu0
    %470 = vdwg.mxu0
    %v471 = vld [vmem:[#allocation2 + $0x210] sm:$0xff]
    %v472 = vld [vmem:[#allocation2 + $0x218] sm:$0xff]
    %v473 = vld [vmem:[#allocation2 + $0x220] sm:$0xff]
    %v474 = vld [vmem:[#allocation2 + $0x228] sm:$0xff]
    %v475 = vld [vmem:[#allocation2 + $0x230] sm:$0xff]
    %v476 = vld [vmem:[#allocation2 + $0x238] sm:$0xff]
    %v477 = vld [vmem:[#allocation2 + $0x240] sm:$0xff]
    %v478 = vld [vmem:[#allocation2 + $0x248] sm:$0xff]
    %v479 = vld [vmem:[#allocation2 + $0x250] sm:$0xff]
    %v480 = vld [vmem:[#allocation2 + $0x258] sm:$0xff]
    %v481 = vld [vmem:[#allocation2 + $0x260] sm:$0xff]
    %v482 = vld [vmem:[#allocation2 + $0x268] sm:$0xff]
    %v483 = vld [vmem:[#allocation2 + $0x270] sm:$0xff]
    %v484 = vld [vmem:[#allocation2 + $0x278] sm:$0xff]
    %v485 = vld [vmem:[#allocation2 + $0x280] sm:$0xff]
    %v486 = vld [vmem:[#allocation2 + $0x288] sm:$0xff]
    %v487 = vlaneseq
    %v488 = vshrl.u32 %v487, 7
    %v489 = vsub.s32 4, %v488
    %v490 = vrot.slane %v30, %v489
    %491 = vmatprep.subr.mxu0 0.0
    %492 = vmatpush1.msra.mxu0 %v486
    %493 = vmatprep.subr.mxu0 0.0
    %494 = vmatpush1.msra.mxu0 %v485
    %495 = vmatprep.subr.mxu0 0.0
    %496 = vmatpush1.msra.mxu0 %v484
    %497 = vmatprep.subr.mxu0 0.0
    %498 = vmatpush1.msra.mxu0 %v483
    %499 = vmatprep.subr.mxu0 0.0
    %500 = vmatpush1.msra.mxu0 %v482
    %501 = vmatprep.subr.mxu0 0.0
    %502 = vmatpush1.msra.mxu0 %v481
    %503 = vmatprep.subr.mxu0 0.0
    %504 = vmatpush1.msra.mxu0 %v480
    %505 = vmatprep.subr.mxu0 0.0
    %506 = vmatpush1.msra.mxu0 %v479
    %507 = vmatprep.subr.mxu0 0.0
    %508 = vmatpush1.msra.mxu0 %v478
    %509 = vmatprep.subr.mxu0 0.0
    %510 = vmatpush1.msra.mxu0 %v477
    %511 = vmatprep.subr.mxu0 0.0
    %512 = vmatpush1.msra.mxu0 %v476
    %513 = vmatprep.subr.mxu0 0.0
    %514 = vmatpush1.msra.mxu0 %v475
    %515 = vmatprep.subr.mxu0 0.0
    %516 = vmatpush1.msra.mxu0 %v474
    %517 = vmatprep.subr.mxu0 0.0
    %518 = vmatpush1.msra.mxu0 %v473
    %519 = vmatprep.subr.mxu0 0.0
    %520 = vmatpush1.msra.mxu0 %v472
    %521 = vmatprep.subr.mxu0 0.0
    %522 = vmatpush1.msra.mxu0 %v471
    %523 = vmatprep.subr.mxu0 0.0
    %524 = vmatpush2.msra.mxu0 0.0
    %525 = vmatprep.subr.mxu0 0.0
    %526 = vmatpush2.msra.mxu0 0.0
    %527 = vmatprep.subr.mxu0 0.0
    %528 = vmatpush2.msra.mxu0 0.0
    %529 = vmatprep.subr.mxu0 0.0
    %530 = vmatpush2.msra.mxu0 0.0
    %531 = vmatprep.subr.mxu0 0.0
    %532 = vmatpush2.msra.mxu0 0.0
    %533 = vmatprep.subr.mxu0 0.0
    %534 = vmatpush2.msra.mxu0 0.0
    %535 = vmatprep.subr.mxu0 0.0
    %536 = vmatpush2.msra.mxu0 0.0
    %537 = vmatprep.subr.mxu0 0.0
    %538 = vmatpush2.msra.mxu0 0.0
    %539 = vmatprep.subr.mxu0 0.0
    %540 = vmatpush2.msra.mxu0 0.0
    %541 = vmatprep.subr.mxu0 0.0
    %542 = vmatpush2.msra.mxu0 0.0
    %543 = vmatprep.subr.mxu0 0.0
    %544 = vmatpush2.msra.mxu0 0.0
    %545 = vmatprep.subr.mxu0 0.0
    %546 = vmatpush2.msra.mxu0 0.0
    %547 = vmatprep.subr.mxu0 0.0
    %548 = vmatpush2.msra.mxu0 0.0
    %549 = vmatprep.subr.mxu0 0.0
    %550 = vmatpush2.msra.mxu0 0.0
    %551 = vmatprep.subr.mxu0 0.0
    %552 = vmatpush2.msra.mxu0 0.0
    %553 = vmatprep.subr.mxu0 0.0
    %554 = vmatpush2.msra.mxu0 0.0
    %555 = vmatprep.mubr.f32.mxu0 0.0
    %556 = vmatmul.mubr.f32.gmra.mxu0 %v468
    %v557 = vpop.f32.mrf.mxu0
    %v558 = vadd.f32 %v490, %v557
    %v559 = vpop.f32.mrf.mxu0
    %560 = vdwg.mxu0
    %vm561 = vcmask 80896
    %562 = vst.msk [vmem:[#allocation5] sm:$0xff] %vm561, %v558
    %564 = vrot.lane.b32.xlu0 %v558, 118
    %v565 = vpop.permute.xlu0 %564
    %vm567 = vcmask 39936
    %568 = vst.msk [vmem:[#allocation6] sm:$0xff] %vm567, %v565
    // Predicated region
    $region14: #{generic_block_forward.1} parent=1 // pred_check
      _
    $region15: #{generic_block_forward.1} parent=1 // pred_check_branch
      %570 = sbr.rel (0) target = $region17
    $region16: #{generic_block_forward.1} parent=1 // pred_region
      %s572 = ssub.s32 128, 128
      %573 = vsyncadd [#allocation4], %s572
      %s575 = sshll.u32 [#allocation5], 4
      %s576 = int_to_ptr.vmem [resolvable:$true] %s575
      %578 = dma.vmem_to_hbm [thread:$0]  %s576, 128, %s2, [#allocation4]
    $region17: #{generic_block_forward.1} parent=1 // pred_fallthru
      _
    // Predicated region
    $region18: #{generic_block_forward.1} parent=1 // pred_check
      _
    $region19: #{generic_block_forward.1} parent=1 // pred_check_branch
      %580 = sbr.rel (0) target = $region21
    $region20: #{generic_block_forward.1} parent=1 // pred_region
      %s582 = ssub.s32 128, 128
      %583 = vsyncadd [#allocation7], %s582
      %s585 = sshll.u32 [#allocation6], 4
      %s586 = int_to_ptr.vmem [resolvable:$true] %s585
      %588 = dma.vmem_to_hbm [thread:$0]  %s586, 128, %s3, [#allocation7]
    $region21: #{generic_block_forward.1} parent=1 // pred_fallthru
      _
    // Predicated region
    $region22: #{generic_block_forward.1} parent=1 // pred_check
      _
    $region23: #{generic_block_forward.1} parent=1 // pred_check_branch
      %590 = sbr.rel (0) target = $region25
    $region24: #{generic_block_forward.1} parent=1 // pred_region
      %591 = dma.done [#allocation4], 128
    $region25: #{generic_block_forward.1} parent=1 // pred_fallthru
      _
    // Predicated region
    $region26: #{generic_block_forward.1} parent=1 // pred_check
      _
    $region27: #{generic_block_forward.1} parent=1 // pred_check_branch
      %593 = sbr.rel (0) target = $region29
    $region28: #{generic_block_forward.1} parent=1 // pred_region
      %594 = dma.done [#allocation7], 128
    $region29: #{generic_block_forward.1} parent=1 // pred_fallthru
      _
    %595 = vsyncpa [#allocation3], 1
    %596 = vsyncpa [#allocation4], 1
    %597 = vsyncpa [#allocation7], 1

</llo_original>
